<compile_context>
chip_gen: v5e
topology: v5e:2x2
jax: 0.10.0
libtpu: 0.0.40
codegen_flags: <defaults>
</compile_context>

<pallas_src>
import functools

import jax
import jax.numpy as jnp
from jax.experimental import pallas as pl
from jax.experimental.pallas import tpu as pltpu


# ---------------------------------------------------------------------------
# Fused kernel
# ---------------------------------------------------------------------------

def _fused_kernel(*refs, expand, use_res, dil, w_pad, l_out):
    """expand(1x1)+ReLU6 -> depthwise 3x3 + ReLU6 -> project(1x1) (+residual).

    Layouts (per grid step = one image):
      x_ref : (1, C_in, Lp) f32  flattened zero-padded spatial frame on lanes
      m_ref : (1, Lp)       f32  1.0 inside the image, 0.0 on halo / tail
      w1    : (hidden, C_in) bf16, BN scale folded
      wd    : (hidden, 9)    f32,  BN scale folded (9 depthwise taps)
      w2    : (oup, hidden)  bf16, BN scale folded
      b1/bd/b2 : (C, 1) f32 folded BN biases
      o_ref : (1, oup, l_out) f32  output frame (rows 0..H-1, padded row
              width, lane-padded to a multiple of 128)
    """
    if expand:
        (x_ref, m_ref, w1_ref, b1_ref,
         wd_ref, bd_ref, w2_ref, b2_ref, o_ref) = refs
    else:
        (x_ref, wd_ref, bd_ref, w2_ref, b2_ref, o_ref) = refs

    x = x_ref[0]                                  # (C_in, Lp), zero on halo

    if expand:
        # 1x1 expand (bf16 MXU, f32 accumulate) + folded-BN bias + ReLU6.
        # The mask re-zeros the halo / tail (the BN bias would otherwise leak
        # into the depthwise zero padding).
        h = jnp.dot(w1_ref[...], x.astype(jnp.bfloat16),
                    preferred_element_type=jnp.float32)
        h = jnp.clip(h + b1_ref[...], 0.0, 6.0) * m_ref[...]
    else:
        h = x                                     # expanse_ratio == 1 path

    # 3x3 depthwise: 9 static lane-offset broadcast-FMAs on the resident h.
    # Three independent per-row partial sums break the serial accumulator
    # dependency chain (VPU has no f32 FMA).
    wd = wd_ref[...]                              # (hidden, 9), scale folded
    parts = []
    for ki in range(3):
        row = ki * dil * w_pad
        p = h[:, row:row + l_out] * wd[:, 3 * ki:3 * ki + 1]
        for kj in (1, 2):
            off = row + kj * dil
            p = p + h[:, off:off + l_out] * wd[:, 3 * ki + kj:3 * ki + kj + 1]
        parts.append(p)
    acc = (parts[0] + parts[1]) + parts[2]
    d = jnp.clip(acc + bd_ref[...], 0.0, 6.0)

    # 1x1 project (bf16 MXU, f32 accumulate) + folded-BN bias (+ residual read
    # from the already-resident input block).
    o = jnp.dot(w2_ref[...], d.astype(jnp.bfloat16),
                preferred_element_type=jnp.float32)
    o = o + b2_ref[...]
    if use_res:
        roff = dil * w_pad + dil                  # center of the padded frame
        o = o + x[:, roff:roff + l_out]
    o_ref[0] = o


# ---------------------------------------------------------------------------
# Wrapper
# ---------------------------------------------------------------------------

def _round_up(v, m):
    return (v + m - 1) // m * m


def mobilev2_residual_forward(x, params, *, stride=1, expanse_ratio=2,
                              dilation=1):
    """Matches MobileV2_Residual.forward (inference BN), NCHW in / NCHW out.

    params: w1 (hidden, inp), wd (hidden, 3, 3), w2 (oup, hidden) conv weights
            and s1/b1, sd/bd, s2/b2 (C,) folded-BN scale/bias vectors.
    """
    assert stride in (1, 2)
    n, c_in, hgt, wid = x.shape
    oup, hidden = params["w2"].shape
    expand = expanse_ratio != 1
    use_res = (stride == 1 and c_in == oup)
    dil = dilation

    h_pad, w_pad = hgt + 2 * dil, wid + 2 * dil
    l_full = h_pad * w_pad                    # flattened padded-frame length
    l_out = hgt * w_pad                       # valid output frame length
    l_out_pad = _round_up(l_out, 128)         # lane-dense (unmasked) stores
    max_off = 2 * dil * w_pad + 2 * dil       # last depthwise tap offset
    lp = _round_up(max(l_full, max_off + l_out_pad), 128)

    x = x.astype(jnp.float32)
    # One-time layout plumbing: zero-pad spatially, flatten the padded plane
    # onto the lane axis, zero the alignment tail (XLA fuses the two pads).
    x_pf = jnp.pad(
        jnp.pad(x, ((0, 0), (0, 0), (dil, dil), (dil, dil))
                ).reshape(n, c_in, l_full),
        ((0, 0), (0, 0), (0, lp - l_full)))

    # Fold BN scales into the conv weights; keep only biases for the kernel.
    # (Normally done once at model-load time, not per forward.)
    fwd = (params["sd"][:, None] *
           params["wd"].reshape(hidden, 9)).astype(jnp.float32)
    fw2 = (params["s2"][:, None] * params["w2"]).astype(jnp.bfloat16)
    bd = params["bd"].reshape(hidden, 1).astype(jnp.float32)
    b2 = params["b2"].reshape(oup, 1).astype(jnp.float32)

    kernel = functools.partial(_fused_kernel, expand=expand, use_res=use_res,
                               dil=dil, w_pad=w_pad, l_out=l_out_pad)

    rep2 = lambda b: (0, 0)                   # grid-invariant 2-D params
    in_specs = [pl.BlockSpec((1, c_in, lp), lambda b: (b, 0, 0))]
    args = [x_pf]
    if expand:
        mask = jnp.pad(jnp.ones((hgt, wid), jnp.float32),
                       ((dil, dil), (dil, dil))).reshape(1, l_full)
        mask = jnp.pad(mask, ((0, 0), (0, lp - l_full)))
        fw1 = (params["s1"][:, None] * params["w1"]).astype(jnp.bfloat16)
        b1 = params["b1"].reshape(hidden, 1).astype(jnp.float32)
        in_specs += [pl.BlockSpec((1, lp), rep2),
                     pl.BlockSpec((hidden, c_in), rep2),
                     pl.BlockSpec((hidden, 1), rep2)]
        args += [mask, fw1, b1]
    in_specs += [pl.BlockSpec((hidden, 9), rep2),
                 pl.BlockSpec((hidden, 1), rep2),
                 pl.BlockSpec((oup, hidden), rep2),
                 pl.BlockSpec((oup, 1), rep2)]
    args += [fwd, bd, fw2, b2]

    out_flat = pl.pallas_call(
        kernel,
        out_shape=jax.ShapeDtypeStruct((n, oup, l_out_pad), jnp.float32),
        grid=(n,),
        in_specs=in_specs,
        out_specs=pl.BlockSpec((1, oup, l_out_pad), lambda b: (b, 0, 0)),
        # Working set is tiny at these shapes; default VMEM limit is fine.
        # TODO(synk): when channel tiling lands, budget tiles for v7x 64 MiB.
        compiler_params=pltpu.CompilerParams(
            dimension_semantics=("parallel",)),
    )(*args)

    # Drop the lane-padding tail and the padded row width.
    out = out_flat[:, :, :l_out].reshape(n, oup, hgt, w_pad)[:, :, :, :wid]
    if stride == 2:
        out = out[:, :, ::2, ::2]
    return out


# ---------------------------------------------------------------------------
# Pure-JAX references (correctness checks)
# ---------------------------------------------------------------------------

def _depthwise_ref(h, wd3, dilation, H, W):
    pad = dilation
    hp = jnp.pad(h, ((0, 0), (0, 0), (pad, pad), (pad, pad)))
    acc = jnp.zeros_like(h)
    for ki in range(3):
        for kj in range(3):
            acc = acc + hp[:, :, ki * dilation:ki * dilation + H,
                           kj * dilation:kj * dilation + W] * \
                  wd3[:, ki, kj][None, :, None, None]
    return acc


def _ref_forward(x, p, *, stride, dilation, expanse_ratio):
    """f32 module semantics (inference BN)."""
    inp, H, W = x.shape[1], x.shape[2], x.shape[3]
    oup = p["w2"].shape[0]
    use_res = (stride == 1 and inp == oup)
    if expanse_ratio != 1:
        h = jnp.einsum("oc,nchw->nohw", p["w1"], x)
        h = h * p["s1"][None, :, None, None] + p["b1"][None, :, None, None]
        h = jnp.clip(h, 0.0, 6.0)
    else:
        h = x
    acc = _depthwise_ref(h, p["wd"], dilation, H, W)
    if stride == 2:
        acc = acc[:, :, ::2, ::2]
    d = jnp.clip(acc * p["sd"][None, :, None, None]
                 + p["bd"][None, :, None, None], 0.0, 6.0)
    o = jnp.einsum("oc,nchw->nohw", p["w2"], d)
    o = o * p["s2"][None, :, None, None] + p["b2"][None, :, None, None]
    return x + o if use_res else o


def _ref_forward_folded(x, p, *, stride, dilation, expanse_ratio):
    """Mirrors the kernel arithmetic (BN folded into weights, bf16 dots)."""
    inp, H, W = x.shape[1], x.shape[2], x.shape[3]
    oup, hidden = p["w2"].shape
    use_res = (stride == 1 and inp == oup)
    if expanse_ratio != 1:
        fw1 = (p["s1"][:, None] * p["w1"]).astype(jnp.bfloat16)
        h = jnp.einsum("oc,nchw->nohw", fw1, x.astype(jnp.bfloat16),
                       preferred_element_type=jnp.float32)
        h = jnp.clip(h + p["b1"][None, :, None, None], 0.0, 6.0)
    else:
        h = x
    fwd = (p["sd"][:, None, None] * p["wd"]).astype(jnp.float32)
    acc = _depthwise_ref(h, fwd, dilation, H, W)
    d = jnp.clip(acc + p["bd"][None, :, None, None], 0.0, 6.0)
    fw2 = (p["s2"][:, None] * p["w2"]).astype(jnp.bfloat16)
    o = jnp.einsum("oc,nchw->nohw", fw2, d.astype(jnp.bfloat16),
                   preferred_element_type=jnp.float32)
    o = o + p["b2"][None, :, None, None]
    if use_res:
        o = o + x
    if stride == 2:
        o = o[:, :, ::2, ::2]
    return o


# ---------------------------------------------------------------------------
# Main
# ---------------------------------------------------------------------------

def _make_params(key, inp, oup, expanse_ratio):
    hidden = int(inp * expanse_ratio)
    ks = jax.random.split(key, 6)

    def bn_fold(k, c):
        k1, k2, k3, k4 = jax.random.split(k, 4)
        gamma = jax.random.uniform(k1, (c,), minval=0.5, maxval=1.5)
        beta = jax.random.normal(k2, (c,)) * 0.1
        mean = jax.random.normal(k3, (c,)) * 0.1
        var = jax.random.uniform(k4, (c,), minval=0.5, maxval=1.5)
        scale = gamma / jnp.sqrt(var + 1e-5)
        bias = beta - mean * scale
        return scale.astype(jnp.float32), bias.astype(jnp.float32)

    w1 = (jax.random.normal(ks[0], (hidden, inp)) * 0.2).astype(jnp.float32)
    wd = (jax.random.normal(ks[1], (hidden, 3, 3)) * 0.2).astype(jnp.float32)
    w2 = (jax.random.normal(ks[2], (oup, hidden)) * 0.2).astype(jnp.float32)
    s1, b1 = bn_fold(ks[3], hidden)
    sd, bd = bn_fold(ks[4], hidden)
    s2, b2 = bn_fold(ks[5], oup)
    return {"w1": w1, "s1": s1, "b1": b1, "wd": wd, "sd": sd, "bd": bd,
            "w2": w2, "s2": s2, "b2": b2}


if __name__ == "__main__":
    N, H, W = 2, 16, 16
    key = jax.random.PRNGKey(0)

    cases = [
        # (inp, oup, stride, expanse_ratio, dilation)
        (4, 4, 1, 2, 1),   # module config under test: residual, expand path
        (4, 8, 2, 2, 1),   # stride-2, no residual
        (4, 4, 1, 1, 2),   # expanse_ratio==1 path, dilation=2, residual
    ]

    for i, (inp, oup, stride, er, dil) in enumerate(cases):
        kp, kx = jax.random.split(jax.random.fold_in(key, i))
        params = _make_params(kp, inp, oup, er)
        x = jax.random.normal(kx, (N, inp, H, W), dtype=jnp.float32)

        out = mobilev2_residual_forward(x, params, stride=stride,
                                        expanse_ratio=er, dilation=dil)
        out = jax.block_until_ready(out)

        ref_fold = _ref_forward_folded(x, params, stride=stride,
                                       dilation=dil, expanse_ratio=er)
        ref_f32 = _ref_forward(x, params, stride=stride,
                               dilation=dil, expanse_ratio=er)

        assert out.shape == ref_f32.shape == ref_fold.shape
        # Tight check vs a reference that uses the identical folded-BN / bf16
        # matmul arithmetic (validates the kernel itself).
        assert jnp.allclose(out, ref_fold, rtol=2e-3, atol=2e-3), \
            f"case {i}: mismatch vs folded/bf16 reference"
        # Loose check vs the pure-f32 module semantics (bf16 matmul rounding).
        assert jnp.allclose(out, ref_f32, rtol=1e-1, atol=1e-1), \
            f"case {i}: mismatch vs f32 module reference"

    print("KERNEL_OK")
</pallas_src>

<mosaic_0001>
module attributes {stable_mosaic.version = 11 : i64} {
  func.func @_fused_kernel(%arg0: i32, %arg1: memref<1x4x512xf32, #tpu.memory_space<vmem>>, %arg2: memref<1x512xf32, #tpu.memory_space<vmem>>, %arg3: memref<8x4xbf16, #tpu.memory_space<vmem>>, %arg4: memref<8x1xf32, #tpu.memory_space<vmem>>, %arg5: memref<8x9xf32, #tpu.memory_space<vmem>>, %arg6: memref<8x1xf32, #tpu.memory_space<vmem>>, %arg7: memref<4x8xbf16, #tpu.memory_space<vmem>>, %arg8: memref<4x1xf32, #tpu.memory_space<vmem>>, %arg9: memref<1x4x384xf32, #tpu.memory_space<vmem>>) attributes {dimension_semantics = [#tpu.dimension_semantics<parallel>], iteration_bounds = array<i64: 2>, scalar_prefetch = 0 : i64, scratch_operands = 0 : i64, tpu.core_type = #tpu.core_type<tc>, window_params = [{transform_indices = @transform_0, window_bounds = array<i64: 1, 4, 512>}, {pipeline_mode = #tpu.pipeline_mode<synchronous>, transform_indices = @transform_1, window_bounds = array<i64: 1, 512>}, {pipeline_mode = #tpu.pipeline_mode<synchronous>, transform_indices = @transform_2, window_bounds = array<i64: 8, 4>}, {pipeline_mode = #tpu.pipeline_mode<synchronous>, transform_indices = @transform_3, window_bounds = array<i64: 8, 1>}, {pipeline_mode = #tpu.pipeline_mode<synchronous>, transform_indices = @transform_4, window_bounds = array<i64: 8, 9>}, {pipeline_mode = #tpu.pipeline_mode<synchronous>, transform_indices = @transform_5, window_bounds = array<i64: 8, 1>}, {pipeline_mode = #tpu.pipeline_mode<synchronous>, transform_indices = @transform_6, window_bounds = array<i64: 4, 8>}, {pipeline_mode = #tpu.pipeline_mode<synchronous>, transform_indices = @transform_7, window_bounds = array<i64: 4, 1>}, {transform_indices = @transform_8, window_bounds = array<i64: 1, 4, 384>}]} {
    %c0 = arith.constant 0 : index
    %c0_0 = arith.constant 0 : index
    %c0_1 = arith.constant 0 : index
    %0 = vector.load %arg1[%c0, %c0_0, %c0_1] : memref<1x4x512xf32, #tpu.memory_space<vmem>>, vector<1x4x512xf32>
    %1 = vector.shape_cast %0 : vector<1x4x512xf32> to vector<4x512xf32>
    %c0_2 = arith.constant 0 : index
    %c0_3 = arith.constant 0 : index
    %2 = vector.load %arg3[%c0_2, %c0_3] : memref<8x4xbf16, #tpu.memory_space<vmem>>, vector<8x4xbf16>
    %3 = arith.truncf %1 : vector<4x512xf32> to vector<4x512xbf16>
    %cst = arith.constant dense<0.000000e+00> : vector<8x512xf32>
    %4 = tpu.matmul %2, %3, %cst {dimension_numbers = #tpu.dot_dimension_numbers<[1], [0], [0], [1], [0, 0, 1, 1], [], []>} : vector<8x4xbf16>, vector<4x512xbf16>, vector<8x512xf32> -> vector<8x512xf32>
    %c0_4 = arith.constant 0 : index
    %c0_5 = arith.constant 0 : index
    %5 = vector.load %arg4[%c0_4, %c0_5] : memref<8x1xf32, #tpu.memory_space<vmem>>, vector<8x1xf32>
    %6 = vector.broadcast %5 : vector<8x1xf32> to vector<8x512xf32>
    %7 = arith.addf %4, %6 : vector<8x512xf32>
    %cst_6 = arith.constant 0.000000e+00 : f32
    %cst_7 = arith.constant 6.000000e+00 : f32
    %8 = vector.broadcast %cst_6 : f32 to vector<8x512xf32>
    %9 = arith.maximumf %8, %7 : vector<8x512xf32>
    %10 = vector.broadcast %cst_7 : f32 to vector<8x512xf32>
    %11 = arith.minimumf %10, %9 : vector<8x512xf32>
    %c0_8 = arith.constant 0 : index
    %c0_9 = arith.constant 0 : index
    %12 = vector.load %arg2[%c0_8, %c0_9] : memref<1x512xf32, #tpu.memory_space<vmem>>, vector<1x512xf32>
    %13 = vector.broadcast %12 : vector<1x512xf32> to vector<8x512xf32>
    %14 = arith.mulf %11, %13 : vector<8x512xf32>
    %c0_10 = arith.constant 0 : index
    %c0_11 = arith.constant 0 : index
    %15 = vector.load %arg5[%c0_10, %c0_11] : memref<8x9xf32, #tpu.memory_space<vmem>>, vector<8x9xf32>
    %16 = vector.extract_strided_slice %14 {offsets = [0, 0], sizes = [8, 384], strides = [1, 1]} : vector<8x512xf32> to vector<8x384xf32>
    %17 = vector.extract_strided_slice %15 {offsets = [0, 0], sizes = [8, 1], strides = [1, 1]} : vector<8x9xf32> to vector<8x1xf32>
    %18 = vector.broadcast %17 : vector<8x1xf32> to vector<8x384xf32>
    %19 = arith.mulf %16, %18 : vector<8x384xf32>
    %20 = vector.extract_strided_slice %14 {offsets = [0, 1], sizes = [8, 384], strides = [1, 1]} : vector<8x512xf32> to vector<8x384xf32>
    %21 = vector.extract_strided_slice %15 {offsets = [0, 1], sizes = [8, 1], strides = [1, 1]} : vector<8x9xf32> to vector<8x1xf32>
    %22 = vector.broadcast %21 : vector<8x1xf32> to vector<8x384xf32>
    %23 = arith.mulf %20, %22 : vector<8x384xf32>
    %24 = arith.addf %19, %23 : vector<8x384xf32>
    %25 = vector.extract_strided_slice %14 {offsets = [0, 2], sizes = [8, 384], strides = [1, 1]} : vector<8x512xf32> to vector<8x384xf32>
    %26 = vector.extract_strided_slice %15 {offsets = [0, 2], sizes = [8, 1], strides = [1, 1]} : vector<8x9xf32> to vector<8x1xf32>
    %27 = vector.broadcast %26 : vector<8x1xf32> to vector<8x384xf32>
    %28 = arith.mulf %25, %27 : vector<8x384xf32>
    %29 = arith.addf %24, %28 : vector<8x384xf32>
    %30 = vector.extract_strided_slice %14 {offsets = [0, 18], sizes = [8, 384], strides = [1, 1]} : vector<8x512xf32> to vector<8x384xf32>
    %31 = vector.extract_strided_slice %15 {offsets = [0, 3], sizes = [8, 1], strides = [1, 1]} : vector<8x9xf32> to vector<8x1xf32>
    %32 = vector.broadcast %31 : vector<8x1xf32> to vector<8x384xf32>
    %33 = arith.mulf %30, %32 : vector<8x384xf32>
    %34 = vector.extract_strided_slice %14 {offsets = [0, 19], sizes = [8, 384], strides = [1, 1]} : vector<8x512xf32> to vector<8x384xf32>
    %35 = vector.extract_strided_slice %15 {offsets = [0, 4], sizes = [8, 1], strides = [1, 1]} : vector<8x9xf32> to vector<8x1xf32>
    %36 = vector.broadcast %35 : vector<8x1xf32> to vector<8x384xf32>
    %37 = arith.mulf %34, %36 : vector<8x384xf32>
    %38 = arith.addf %33, %37 : vector<8x384xf32>
    %39 = vector.extract_strided_slice %14 {offsets = [0, 20], sizes = [8, 384], strides = [1, 1]} : vector<8x512xf32> to vector<8x384xf32>
    %40 = vector.extract_strided_slice %15 {offsets = [0, 5], sizes = [8, 1], strides = [1, 1]} : vector<8x9xf32> to vector<8x1xf32>
    %41 = vector.broadcast %40 : vector<8x1xf32> to vector<8x384xf32>
    %42 = arith.mulf %39, %41 : vector<8x384xf32>
    %43 = arith.addf %38, %42 : vector<8x384xf32>
    %44 = vector.extract_strided_slice %14 {offsets = [0, 36], sizes = [8, 384], strides = [1, 1]} : vector<8x512xf32> to vector<8x384xf32>
    %45 = vector.extract_strided_slice %15 {offsets = [0, 6], sizes = [8, 1], strides = [1, 1]} : vector<8x9xf32> to vector<8x1xf32>
    %46 = vector.broadcast %45 : vector<8x1xf32> to vector<8x384xf32>
    %47 = arith.mulf %44, %46 : vector<8x384xf32>
    %48 = vector.extract_strided_slice %14 {offsets = [0, 37], sizes = [8, 384], strides = [1, 1]} : vector<8x512xf32> to vector<8x384xf32>
    %49 = vector.extract_strided_slice %15 {offsets = [0, 7], sizes = [8, 1], strides = [1, 1]} : vector<8x9xf32> to vector<8x1xf32>
    %50 = vector.broadcast %49 : vector<8x1xf32> to vector<8x384xf32>
    %51 = arith.mulf %48, %50 : vector<8x384xf32>
    %52 = arith.addf %47, %51 : vector<8x384xf32>
    %53 = vector.extract_strided_slice %14 {offsets = [0, 38], sizes = [8, 384], strides = [1, 1]} : vector<8x512xf32> to vector<8x384xf32>
    %54 = vector.extract_strided_slice %15 {offsets = [0, 8], sizes = [8, 1], strides = [1, 1]} : vector<8x9xf32> to vector<8x1xf32>
    %55 = vector.broadcast %54 : vector<8x1xf32> to vector<8x384xf32>
    %56 = arith.mulf %53, %55 : vector<8x384xf32>
    %57 = arith.addf %52, %56 : vector<8x384xf32>
    %58 = arith.addf %29, %43 : vector<8x384xf32>
    %59 = arith.addf %58, %57 : vector<8x384xf32>
    %c0_12 = arith.constant 0 : index
    %c0_13 = arith.constant 0 : index
    %60 = vector.load %arg6[%c0_12, %c0_13] : memref<8x1xf32, #tpu.memory_space<vmem>>, vector<8x1xf32>
    %61 = vector.broadcast %60 : vector<8x1xf32> to vector<8x384xf32>
    %62 = arith.addf %59, %61 : vector<8x384xf32>
    %cst_14 = arith.constant 0.000000e+00 : f32
    %cst_15 = arith.constant 6.000000e+00 : f32
    %63 = vector.broadcast %cst_14 : f32 to vector<8x384xf32>
    %64 = arith.maximumf %63, %62 : vector<8x384xf32>
    %65 = vector.broadcast %cst_15 : f32 to vector<8x384xf32>
    %66 = arith.minimumf %65, %64 : vector<8x384xf32>
    %c0_16 = arith.constant 0 : index
    %c0_17 = arith.constant 0 : index
    %67 = vector.load %arg7[%c0_16, %c0_17] : memref<4x8xbf16, #tpu.memory_space<vmem>>, vector<4x8xbf16>
    %68 = arith.truncf %66 : vector<8x384xf32> to vector<8x384xbf16>
    %cst_18 = arith.constant dense<0.000000e+00> : vector<4x384xf32>
    %69 = tpu.matmul %67, %68, %cst_18 {dimension_numbers = #tpu.dot_dimension_numbers<[1], [0], [0], [1], [0, 0, 1, 1], [], []>} : vector<4x8xbf16>, vector<8x384xbf16>, vector<4x384xf32> -> vector<4x384xf32>
    %c0_19 = arith.constant 0 : index
    %c0_20 = arith.constant 0 : index
    %70 = vector.load %arg8[%c0_19, %c0_20] : memref<4x1xf32, #tpu.memory_space<vmem>>, vector<4x1xf32>
    %71 = vector.broadcast %70 : vector<4x1xf32> to vector<4x384xf32>
    %72 = arith.addf %69, %71 : vector<4x384xf32>
    %73 = vector.extract_strided_slice %1 {offsets = [0, 19], sizes = [4, 384], strides = [1, 1]} : vector<4x512xf32> to vector<4x384xf32>
    %74 = arith.addf %72, %73 : vector<4x384xf32>
    %c0_21 = arith.constant 0 : index
    %c0_22 = arith.constant 0 : index
    %c0_23 = arith.constant 0 : index
    %75 = vector.load %arg9[%c0_21, %c0_22, %c0_23] : memref<1x4x384xf32, #tpu.memory_space<vmem>>, vector<1x4x384xf32>
    %76 = vector.shape_cast %75 : vector<1x4x384xf32> to vector<4x384xf32>
    %77 = vector.shape_cast %74 : vector<4x384xf32> to vector<1x4x384xf32>
    tpu.vector_store %arg9[%c0_21, %c0_22, %c0_23], %77 {strides = array<i32>} : memref<1x4x384xf32, #tpu.memory_space<vmem>>, vector<1x4x384xf32>,
    return
  }
  func.func @transform_0(%arg0: i32) -> (i32, i32, i32) {
    %c0_i32 = arith.constant 0 : i32
    %c0_i32_0 = arith.constant 0 : i32
    %c0_i32_1 = arith.constant 0 : i32
    return %arg0, %c0_i32, %c0_i32_0 : i32, i32, i32
  }
  func.func @transform_1(%arg0: i32) -> (i32, i32) {
    %c0_i32 = arith.constant 0 : i32
    %c0_i32_0 = arith.constant 0 : i32
    %c0_i32_1 = arith.constant 0 : i32
    return %c0_i32, %c0_i32_0 : i32, i32
  }
  func.func @transform_2(%arg0: i32) -> (i32, i32) {
    %c0_i32 = arith.constant 0 : i32
    %c0_i32_0 = arith.constant 0 : i32
    %c0_i32_1 = arith.constant 0 : i32
    return %c0_i32, %c0_i32_0 : i32, i32
  }
  func.func @transform_3(%arg0: i32) -> (i32, i32) {
    %c0_i32 = arith.constant 0 : i32
    %c0_i32_0 = arith.constant 0 : i32
    %c0_i32_1 = arith.constant 0 : i32
    return %c0_i32, %c0_i32_0 : i32, i32
  }
  func.func @transform_4(%arg0: i32) -> (i32, i32) {
    %c0_i32 = arith.constant 0 : i32
    %c0_i32_0 = arith.constant 0 : i32
    %c0_i32_1 = arith.constant 0 : i32
    return %c0_i32, %c0_i32_0 : i32, i32
  }
  func.func @transform_5(%arg0: i32) -> (i32, i32) {
    %c0_i32 = arith.constant 0 : i32
    %c0_i32_0 = arith.constant 0 : i32
    %c0_i32_1 = arith.constant 0 : i32
    return %c0_i32, %c0_i32_0 : i32, i32
  }
  func.func @transform_6(%arg0: i32) -> (i32, i32) {
    %c0_i32 = arith.constant 0 : i32
    %c0_i32_0 = arith.constant 0 : i32
    %c0_i32_1 = arith.constant 0 : i32
    return %c0_i32, %c0_i32_0 : i32, i32
  }
  func.func @transform_7(%arg0: i32) -> (i32, i32) {
    %c0_i32 = arith.constant 0 : i32
    %c0_i32_0 = arith.constant 0 : i32
    %c0_i32_1 = arith.constant 0 : i32
    return %c0_i32, %c0_i32_0 : i32, i32
  }
  func.func @transform_8(%arg0: i32) -> (i32, i32, i32) {
    %c0_i32 = arith.constant 0 : i32
    %c0_i32_0 = arith.constant 0 : i32
    %c0_i32_1 = arith.constant 0 : i32
    return %arg0, %c0_i32, %c0_i32_0 : i32, i32, i32
  }
}

</mosaic_0001>

<llo_original>
// kernel: tpu_custom_call.1
$region0: #{tpu_custom_call.1}
  #allocation0 [shape = 'u32[]', space=smem, size = 0x4, offset = 0x4, fixed_abs, tag = 'smem constant byte address 0x4 - core index']
  #allocation1 [shape = 'u32[72,128]{1,0:T(1,128)}', space=vmem, size = 0x9000, scoped, tag = 'internal scratch']
  %s0 = inlined_call_operand.hbm [shape: f32[2,4,512], index: 0, kind: input, shape index: {}]
  %s1 = inlined_call_operand.vmem [shape: f32[1,512], index: 1, kind: input, shape index: {}]
  %s2 = inlined_call_operand.vmem [shape: bf16[8,4], index: 2, kind: input, shape index: {}]
  %s3 = inlined_call_operand.vmem [shape: f32[8,1], index: 3, kind: input, shape index: {}]
  %s4 = inlined_call_operand.vmem [shape: f32[8,9], index: 4, kind: input, shape index: {}]
  %s5 = inlined_call_operand.vmem [shape: f32[8,1], index: 5, kind: input, shape index: {}]
  %s6 = inlined_call_operand.vmem [shape: bf16[4,8], index: 6, kind: input, shape index: {}]
  %s7 = inlined_call_operand.vmem [shape: f32[4,1], index: 7, kind: input, shape index: {}]
  %s8 = inlined_call_operand.hbm [shape: f32[2,4,384], index: 8, kind: output, shape index: {}]
  %s9 = sld [smem:[#allocation0]]
  $region69: #{tpu_custom_call.1} parent=0
    _
  %s11 = ssub.s32 1, %s9
  %s12 = scalar_select 0, %s11, %s9
  $region1: #{tpu_custom_call.1} parent=0
    #allocation2 [shape = 'u8[16384]{0}', space=vmem, size = 0x4000, scoped, tag = 'input window, operand 0']
    #allocation3 [shape = 's32[2]{0}', space=sflag, size = 0x8, scoped, tag = 'scoped memory for tpu_custom_call.1']
    #allocation4 [shape = 's32[2]{0}', space=sflag, size = 0x8, scoped, tag = 'scoped memory for tpu_custom_call.1']
    #allocation5 [shape = 'u8[12288]{0}', space=vmem, size = 0x3000, scoped, tag = 'output window, operand 0']
    %13 = vsyncpa [#allocation3], 0
    %s14 = scalar_lea.sflag [#allocation3], 1
    %15 = vsyncpa %s14, 0
    %16 = vsyncpa [#allocation4], 0
    %s17 = scalar_lea.sflag [#allocation4], 1
    %18 = vsyncpa %s17, 0
    loop: start=0, step=1, limit=4
    $region2: #{tpu_custom_call.1} parent=1 // loop_pre_header
      _
    $region3: #{tpu_custom_call.1} parent=1 // loop_header
      %s20 = sphi 0, %s24
      %p21 = scmp.ge.s32.totalorder %s20, 4
      %s30 = sphi 0, %s32
      %s33 = sphi 0, %s30
      %s34 = sphi 0, %s33
      %s50 = sphi 0, %s34
      %s54 = sphi 0, %s54
      %s56 = sphi 0, %s54
      %s57 = sphi 0, %s56
      %s71 = sphi 0, %s57
      %s75 = sphi 0, %s75
      %s77 = sphi 0, %s75
      %s78 = sphi 0, %s77
      %s92 = sphi 0, %s78
      %s96 = sphi 0, %s96
      %s98 = sphi 0, %s96
      %s99 = sphi 0, %s98
      %s113 = sphi 0, %s99
      %s117 = sphi 0, %s117
      %s119 = sphi 0, %s117
      %s120 = sphi 0, %s119
      %s134 = sphi 0, %s120
      %s138 = sphi 0, %s138
      %s140 = sphi 0, %s138
      %s141 = sphi 0, %s140
      %s155 = sphi 0, %s141
      %s159 = sphi 0, %s159
      %s161 = sphi 0, %s159
      %s162 = sphi 0, %s161
      %s176 = sphi 0, %s162
      %s180 = sphi 0, %s180
      %s182 = sphi 0, %s180
      %s183 = sphi 0, %s182
      %s197 = sphi 0, %s183
      %s203 = sphi 0, %s205
      %s206 = sphi 0, %s203
      %s207 = sphi 0, %s206
      %s223 = sphi 0, %s207
    $region4: #{tpu_custom_call.1} parent=1 // loop_header_branch
      %23 = sbr.rel (%p21) target = $region8
    $region5: #{tpu_custom_call.1} parent=1 // loop_body
      %s25 = ssub.s32 %s20, 1
      %s26 = ssub.s32 %s20, 2
      %s27 = sadd.s32 %s20, 1
      %s28 = ssub.s32 %s20, %s27
      %p29 = scmp.eq.s32.totalorder %s28, 0
      %s31 = sadd.s32 %s30, 1
      %s32 = scalar_select %p29, %s30, %s31
      %p35 = pneg %p29
      %p36 = scmp.eq.s32.totalorder %s20, 1
      %p37 = por %p35, %p36
      %p38 = scmp.ne.s32.totalorder %s30, %s33
      %p39 = scmp.eq.s32.totalorder %s20, 0
      %p40 = por %p38, %p39
      %p41 = scmp.ne.s32.totalorder %s30, %s33
      %p42 = scmp.eq.s32.totalorder %s25, 1
      %p43 = por %p41, %p42
      %p44 = scmp.ne.s32.totalorder %s33, %s34
      %p45 = scmp.eq.s32.totalorder %s25, 0
      %p46 = por %p44, %p45
      %p47 = scmp.ne.s32.totalorder %s33, %s34
      %p48 = scmp.eq.s32.totalorder %s26, 1
      %p49 = por %p47, %p48
      %p51 = scmp.ne.s32.totalorder %s34, %s50
      %p52 = scmp.eq.s32.totalorder %s26, 0
      %p53 = por %p51, %p52
      %s55 = sadd.s32 %s54, 1
      %p58 = scmp.eq.s32.totalorder %s20, 1
      %p59 = scmp.ne.s32.totalorder %s54, %s56
      %p60 = scmp.eq.s32.totalorder %s20, 0
      %p61 = por %p59, %p60
      %p62 = scmp.ne.s32.totalorder %s54, %s56
      %p63 = scmp.eq.s32.totalorder %s25, 1
      %p64 = por %p62, %p63
      %p65 = scmp.ne.s32.totalorder %s56, %s57
      %p66 = scmp.eq.s32.totalorder %s25, 0
      %p67 = por %p65, %p66
      %p68 = scmp.ne.s32.totalorder %s56, %s57
      %p69 = scmp.eq.s32.totalorder %s26, 1
      %p70 = por %p68, %p69
      %p72 = scmp.ne.s32.totalorder %s57, %s71
      %p73 = scmp.eq.s32.totalorder %s26, 0
      %p74 = por %p72, %p73
      %s76 = sadd.s32 %s75, 1
      %p79 = scmp.eq.s32.totalorder %s20, 1
      %p80 = scmp.ne.s32.totalorder %s75, %s77
      %p81 = scmp.eq.s32.totalorder %s20, 0
      %p82 = por %p80, %p81
      %p83 = scmp.ne.s32.totalorder %s75, %s77
      %p84 = scmp.eq.s32.totalorder %s25, 1
      %p85 = por %p83, %p84
      %p86 = scmp.ne.s32.totalorder %s77, %s78
      %p87 = scmp.eq.s32.totalorder %s25, 0
      %p88 = por %p86, %p87
      %p89 = scmp.ne.s32.totalorder %s77, %s78
      %p90 = scmp.eq.s32.totalorder %s26, 1
      %p91 = por %p89, %p90
      %p93 = scmp.ne.s32.totalorder %s78, %s92
      %p94 = scmp.eq.s32.totalorder %s26, 0
      %p95 = por %p93, %p94
      %s97 = sadd.s32 %s96, 1
      %p100 = scmp.eq.s32.totalorder %s20, 1
      %p101 = scmp.ne.s32.totalorder %s96, %s98
      %p102 = scmp.eq.s32.totalorder %s20, 0
      %p103 = por %p101, %p102
      %p104 = scmp.ne.s32.totalorder %s96, %s98
      %p105 = scmp.eq.s32.totalorder %s25, 1
      %p106 = por %p104, %p105
      %p107 = scmp.ne.s32.totalorder %s98, %s99
      %p108 = scmp.eq.s32.totalorder %s25, 0
      %p109 = por %p107, %p108
      %p110 = scmp.ne.s32.totalorder %s98, %s99
      %p111 = scmp.eq.s32.totalorder %s26, 1
      %p112 = por %p110, %p111
      %p114 = scmp.ne.s32.totalorder %s99, %s113
      %p115 = scmp.eq.s32.totalorder %s26, 0
      %p116 = por %p114, %p115
      %s118 = sadd.s32 %s117, 1
      %p121 = scmp.eq.s32.totalorder %s20, 1
      %p122 = scmp.ne.s32.totalorder %s117, %s119
      %p123 = scmp.eq.s32.totalorder %s20, 0
      %p124 = por %p122, %p123
      %p125 = scmp.ne.s32.totalorder %s117, %s119
      %p126 = scmp.eq.s32.totalorder %s25, 1
      %p127 = por %p125, %p126
      %p128 = scmp.ne.s32.totalorder %s119, %s120
      %p129 = scmp.eq.s32.totalorder %s25, 0
      %p130 = por %p128, %p129
      %p131 = scmp.ne.s32.totalorder %s119, %s120
      %p132 = scmp.eq.s32.totalorder %s26, 1
      %p133 = por %p131, %p132
      %p135 = scmp.ne.s32.totalorder %s120, %s134
      %p136 = scmp.eq.s32.totalorder %s26, 0
      %p137 = por %p135, %p136
      %s139 = sadd.s32 %s138, 1
      %p142 = scmp.eq.s32.totalorder %s20, 1
      %p143 = scmp.ne.s32.totalorder %s138, %s140
      %p144 = scmp.eq.s32.totalorder %s20, 0
      %p145 = por %p143, %p144
      %p146 = scmp.ne.s32.totalorder %s138, %s140
      %p147 = scmp.eq.s32.totalorder %s25, 1
      %p148 = por %p146, %p147
      %p149 = scmp.ne.s32.totalorder %s140, %s141
      %p150 = scmp.eq.s32.totalorder %s25, 0
      %p151 = por %p149, %p150
      %p152 = scmp.ne.s32.totalorder %s140, %s141
      %p153 = scmp.eq.s32.totalorder %s26, 1
      %p154 = por %p152, %p153
      %p156 = scmp.ne.s32.totalorder %s141, %s155
      %p157 = scmp.eq.s32.totalorder %s26, 0
      %p158 = por %p156, %p157
      %s160 = sadd.s32 %s159, 1
      %p163 = scmp.eq.s32.totalorder %s20, 1
      %p164 = scmp.ne.s32.totalorder %s159, %s161
      %p165 = scmp.eq.s32.totalorder %s20, 0
      %p166 = por %p164, %p165
      %p167 = scmp.ne.s32.totalorder %s159, %s161
      %p168 = scmp.eq.s32.totalorder %s25, 1
      %p169 = por %p167, %p168
      %p170 = scmp.ne.s32.totalorder %s161, %s162
      %p171 = scmp.eq.s32.totalorder %s25, 0
      %p172 = por %p170, %p171
      %p173 = scmp.ne.s32.totalorder %s161, %s162
      %p174 = scmp.eq.s32.totalorder %s26, 1
      %p175 = por %p173, %p174
      %p177 = scmp.ne.s32.totalorder %s162, %s176
      %p178 = scmp.eq.s32.totalorder %s26, 0
      %p179 = por %p177, %p178
      %s181 = sadd.s32 %s180, 1
      %p184 = scmp.eq.s32.totalorder %s20, 1
      %p185 = scmp.ne.s32.totalorder %s180, %s182
      %p186 = scmp.eq.s32.totalorder %s20, 0
      %p187 = por %p185, %p186
      %p188 = scmp.ne.s32.totalorder %s180, %s182
      %p189 = scmp.eq.s32.totalorder %s25, 1
      %p190 = por %p188, %p189
      %p191 = scmp.ne.s32.totalorder %s182, %s183
      %p192 = scmp.eq.s32.totalorder %s25, 0
      %p193 = por %p191, %p192
      %p194 = scmp.ne.s32.totalorder %s182, %s183
      %p195 = scmp.eq.s32.totalorder %s26, 1
      %p196 = por %p194, %p195
      %p198 = scmp.ne.s32.totalorder %s183, %s197
      %p199 = scmp.eq.s32.totalorder %s26, 0
      %p200 = por %p198, %p199
      %s201 = ssub.s32 %s20, %s27
      %p202 = scmp.eq.s32.totalorder %s201, 0
      %s204 = sadd.s32 %s203, 1
      %s205 = scalar_select %p202, %s203, %s204
      %p208 = pneg %p202
      %p209 = scmp.eq.s32.totalorder %s20, 1
      %p210 = por %p208, %p209
      %p211 = scmp.ne.s32.totalorder %s203, %s206
      %p212 = scmp.eq.s32.totalorder %s20, 0
      %p213 = por %p211, %p212
      %p214 = scmp.ne.s32.totalorder %s203, %s206
      %p215 = scmp.eq.s32.totalorder %s25, 1
      %p216 = por %p214, %p215
      %p217 = scmp.ne.s32.totalorder %s206, %s207
      %p218 = scmp.eq.s32.totalorder %s25, 0
      %p219 = por %p217, %p218
      %p220 = scmp.ne.s32.totalorder %s206, %s207
      %p221 = scmp.eq.s32.totalorder %s26, 1
      %p222 = por %p220, %p221
      %p224 = scmp.ne.s32.totalorder %s207, %s223
      %p225 = scmp.eq.s32.totalorder %s26, 0
      %p226 = por %p224, %p225
      %p227 = scmp.le.s32.totalorder 1, %s20
      %p228 = scmp.lt.s32.totalorder %s20, 3
      %p229 = pnand %p227, %p228
      %p230 = pneg %p229
      // Predicated region
      $region9: #{tpu_custom_call.1} parent=5 // pred_check
        _
      $region10: #{tpu_custom_call.1} parent=5 // pred_check_branch
        %232 = sbr.rel (%p229) target = $region12
      $region11: #{tpu_custom_call.1} parent=5 // pred_region
        %s233 = ssub.s32 %s20, 1
        // Predicated region
        $region13: #{tpu_custom_call.1} parent=11 // pred_check
          %p234 = pneg %p67
        $region14: #{tpu_custom_call.1} parent=11 // pred_check_branch
          %236 = sbr.rel (%p234) target = $region16
        $region15: #{tpu_custom_call.1} parent=11 // pred_region
          _
        $region16: #{tpu_custom_call.1} parent=11 // pred_fallthru
          _
        // Predicated region
        $region17: #{tpu_custom_call.1} parent=11 // pred_check
          %p237 = pneg %p88
        $region18: #{tpu_custom_call.1} parent=11 // pred_check_branch
          %239 = sbr.rel (%p237) target = $region20
        $region19: #{tpu_custom_call.1} parent=11 // pred_region
          _
        $region20: #{tpu_custom_call.1} parent=11 // pred_fallthru
          _
        // Predicated region
        $region21: #{tpu_custom_call.1} parent=11 // pred_check
          %p240 = pneg %p109
        $region22: #{tpu_custom_call.1} parent=11 // pred_check_branch
          %242 = sbr.rel (%p240) target = $region24
        $region23: #{tpu_custom_call.1} parent=11 // pred_region
          _
        $region24: #{tpu_custom_call.1} parent=11 // pred_fallthru
          _
        // Predicated region
        $region25: #{tpu_custom_call.1} parent=11 // pred_check
          %p243 = pneg %p130
        $region26: #{tpu_custom_call.1} parent=11 // pred_check_branch
          %245 = sbr.rel (%p243) target = $region28
        $region27: #{tpu_custom_call.1} parent=11 // pred_region
          _
        $region28: #{tpu_custom_call.1} parent=11 // pred_fallthru
          _
        // Predicated region
        $region29: #{tpu_custom_call.1} parent=11 // pred_check
          %p246 = pneg %p151
        $region30: #{tpu_custom_call.1} parent=11 // pred_check_branch
          %248 = sbr.rel (%p246) target = $region32
        $region31: #{tpu_custom_call.1} parent=11 // pred_region
          _
        $region32: #{tpu_custom_call.1} parent=11 // pred_fallthru
          _
        // Predicated region
        $region33: #{tpu_custom_call.1} parent=11 // pred_check
          %p249 = pneg %p172
        $region34: #{tpu_custom_call.1} parent=11 // pred_check_branch
          %251 = sbr.rel (%p249) target = $region36
        $region35: #{tpu_custom_call.1} parent=11 // pred_region
          _
        $region36: #{tpu_custom_call.1} parent=11 // pred_fallthru
          _
        // Predicated region
        $region37: #{tpu_custom_call.1} parent=11 // pred_check
          %p252 = pneg %p193
        $region38: #{tpu_custom_call.1} parent=11 // pred_check_branch
          %254 = sbr.rel (%p252) target = $region40
        $region39: #{tpu_custom_call.1} parent=11 // pred_region
          _
        $region40: #{tpu_custom_call.1} parent=11 // pred_fallthru
          _
      $region12: #{tpu_custom_call.1} parent=5 // pred_fallthru
        _
      %p255 = scmp.lt.s32.totalorder %s20, 2
      // Predicated region
      $region41: #{tpu_custom_call.1} parent=5 // pred_check
        %p256 = pneg %p255
      $region42: #{tpu_custom_call.1} parent=5 // pred_check_branch
        %258 = sbr.rel (%p256) target = $region44
      $region43: #{tpu_custom_call.1} parent=5 // pred_region
        // Predicated region
        $region45: #{tpu_custom_call.1} parent=43 // pred_check
          %p259 = pneg %p40
        $region46: #{tpu_custom_call.1} parent=43 // pred_check_branch
          %261 = sbr.rel (%p259) target = $region48
        $region47: #{tpu_custom_call.1} parent=43 // pred_region
          %s262 = sand.u32 %s30, 1
          %s263 = scalar_lea.sflag [#allocation3], %s262
          %s264 = sand.u32 %s30, 1
          %s265 = smul.addr %s264, 16
          %s266 = scalar_lea.vmem [#allocation2], %s265
          %268 = vsyncadd %s263, 0
          %s269 = smul.addr %s20, 4
          %s270 = smul.addr %s269, 4
          %s271 = scalar_lea.hbm %s0, %s270
          %s273 = sshll.u32 %s271, 4
          %s274 = int_to_ptr.hbm [resolvable:$true] %s273
          %s275 = sshll.u32 %s266, 4
          %s276 = int_to_ptr.vmem [resolvable:$true] %s275
          %278 = dma.hbm_to_vmem [thread:$0]  %s274, 256, %s276, %s263
        $region48: #{tpu_custom_call.1} parent=43 // pred_fallthru
          _
      $region44: #{tpu_custom_call.1} parent=5 // pred_fallthru
        _
      %p279 = scmp.le.s32.totalorder 1, %s20
      %p280 = scmp.lt.s32.totalorder %s20, 3
      %p281 = pnand %p279, %p280
      %p282 = pneg %p281
      // Predicated region
      $region49: #{tpu_custom_call.1} parent=5 // pred_check
        _
      $region50: #{tpu_custom_call.1} parent=5 // pred_check_branch
        %284 = sbr.rel (%p281) target = $region52
      $region51: #{tpu_custom_call.1} parent=5 // pred_region
        %s285 = ssub.s32 %s20, 1
        %s286 = sand.u32 %s33, 1
        %s287 = scalar_lea.sflag [#allocation3], %s286
        %s288 = sand.u32 %s33, 1
        %s289 = smul.addr %s288, 16
        %s290 = scalar_lea.vmem [#allocation2], %s289
        // Predicated region
        $region53: #{tpu_custom_call.1} parent=51 // pred_check
          %p291 = pneg %p46
        $region54: #{tpu_custom_call.1} parent=51 // pred_check_branch
          %293 = sbr.rel (%p291) target = $region56
        $region55: #{tpu_custom_call.1} parent=51 // pred_region
          %295 = dma.done %s287, 256
        $region56: #{tpu_custom_call.1} parent=51 // pred_fallthru
          _
        %s296 = sand.u32 %s33, 1
        %s297 = scalar_lea.sflag [#allocation3], %s296
        %s298 = sand.u32 %s33, 1
        %s299 = smul.addr %s298, 16
        %s300 = scalar_lea.vmem [#allocation2], %s299
        %p301 = pneg %p46
        %p302 = pneg %p43
        %p303 = pneg %p67
        %p304 = pneg %p64
        %p305 = pneg %p88
        %p306 = pneg %p85
        %p307 = pneg %p109
        %p308 = pneg %p106
        %p309 = pneg %p130
        %p310 = pneg %p127
        %p311 = pneg %p151
        %p312 = pneg %p148
        %p313 = pneg %p172
        %p314 = pneg %p169
        %p315 = pneg %p193
        %p316 = pneg %p190
        %p317 = pneg %p219
        %p318 = pneg %p216
        %s319 = sand.u32 %s206, 1
        %s320 = scalar_lea.sflag [#allocation4], %s319
        %s321 = sand.u32 %s206, 1
        %s322 = smul.addr %s321, 12
        %s323 = scalar_lea.vmem [#allocation5], %s322
        %v325 = vld [vmem:[%s290] sm:$0xff]
        %v326 = vld [vmem:[%s290 + $0x8] sm:$0xff]
        %v327 = vld [vmem:[%s2] sm:$0xf]
        %330 = vst [vmem:[#allocation1] ss:$2 sm:$0xff] %v325
        %s331 = scalar_lea.vmem [#allocation1], 16
        %332 = vst [vmem:[%s331] ss:$2 sm:$0xff] %v326
        %v333 = vld.sshfl [vmem:[#allocation1] sm:$0xff pattern:$0x75316420]
        %v334 = vld.sshfl [vmem:[#allocation1 + $0x8] sm:$0xff pattern:$0x75316420]
        %v335 = vld.sshfl [vmem:[#allocation1 + $0x10] sm:$0xff pattern:$0x75316420]
        %v336 = vld.sshfl [vmem:[#allocation1 + $0x18] sm:$0xff pattern:$0x75316420]
        %v341 = vpack.c.bf16 %v333, %v333
        %v342 = vpack.c.bf16 %v334, %v334
        %v343 = vpack.c.bf16 %v335, %v335
        %v344 = vpack.c.bf16 %v336, %v336
        %v345 = vld [vmem:[%s3] sm:$0xff]
        %347 = vset.pattern.permute.xlu0 0
        %348 = vperm.xlu0 %347, %v345
        %v349 = vpop.permute.xlu0 %348
        %vm351 = vcmask 31744
        %v353 = vsel %vm351, %v327, 0
        %vm355 = vcmask 1041408
        %v357 = vsel %vm355, %v341, 0
        %v360 = vsel %vm355, %v342, 0
        %v363 = vsel %vm355, %v343, 0
        %v366 = vsel %vm355, %v344, 0
        %368 = vmatpush.bf16.msra.mxu0 0
        %369 = vmatpush.bf16.msra.mxu0 0
        %370 = vmatpush.bf16.msra.mxu0 0
        %371 = vmatpush.bf16.msra.mxu0 0
        %372 = vmatpush.bf16.msra.mxu0 0
        %373 = vmatpush.bf16.msra.mxu0 0
        %374 = vmatpush.bf16.msra.mxu0 0
        %375 = vmatpush.bf16.msra.mxu0 %v357
        %376 = vmatmul.bf16.gmra.mxu0 %v353
        %v377 = vpop.f32.mrf.mxu0
        %v378 = vadd.f32 %v349, %v377
        %v379 = vpop.f32.mrf.mxu0
        %380 = vdwg.mxu0
        %381 = vmatpush.bf16.msra.mxu0 0
        %382 = vmatpush.bf16.msra.mxu0 0
        %383 = vmatpush.bf16.msra.mxu0 0
        %384 = vmatpush.bf16.msra.mxu0 0
        %385 = vmatpush.bf16.msra.mxu0 0
        %386 = vmatpush.bf16.msra.mxu0 0
        %387 = vmatpush.bf16.msra.mxu0 0
        %388 = vmatpush.bf16.msra.mxu0 %v360
        %389 = vmatmul.bf16.gmra.mxu0 %v353
        %v390 = vpop.f32.mrf.mxu0
        %v391 = vadd.f32 %v349, %v390
        %v392 = vpop.f32.mrf.mxu0
        %393 = vdwg.mxu0
        %394 = vmatpush.bf16.msra.mxu0 0
        %395 = vmatpush.bf16.msra.mxu0 0
        %396 = vmatpush.bf16.msra.mxu0 0
        %397 = vmatpush.bf16.msra.mxu0 0
        %398 = vmatpush.bf16.msra.mxu0 0
        %399 = vmatpush.bf16.msra.mxu0 0
        %400 = vmatpush.bf16.msra.mxu0 0
        %401 = vmatpush.bf16.msra.mxu0 %v363
        %402 = vmatmul.bf16.gmra.mxu0 %v353
        %v403 = vpop.f32.mrf.mxu0
        %v404 = vadd.f32 %v349, %v403
        %v405 = vpop.f32.mrf.mxu0
        %406 = vdwg.mxu0
        %407 = vmatpush.bf16.msra.mxu0 0
        %408 = vmatpush.bf16.msra.mxu0 0
        %409 = vmatpush.bf16.msra.mxu0 0
        %410 = vmatpush.bf16.msra.mxu0 0
        %411 = vmatpush.bf16.msra.mxu0 0
        %412 = vmatpush.bf16.msra.mxu0 0
        %413 = vmatpush.bf16.msra.mxu0 0
        %414 = vmatpush.bf16.msra.mxu0 %v366
        %415 = vmatmul.bf16.gmra.mxu0 %v353
        %v416 = vpop.f32.mrf.mxu0
        %v417 = vadd.f32 %v349, %v416
        %v418 = vpop.f32.mrf.mxu0
        %419 = vdwg.mxu0
        %v420 = vmax.f32 %v378, 0.0
        %v421 = vmax.f32 %v391, 0.0
        %v422 = vmax.f32 %v404, 0.0
        %v423 = vmax.f32 %v417, 0.0
        %v424 = vmin.f32 %v420, 6.0
        %v425 = vmin.f32 %v421, 6.0
        %v426 = vmin.f32 %v422, 6.0
        %v427 = vmin.f32 %v423, 6.0
        %v428 = vld [vmem:[%s1] sm:$0xf]
        %v430 = vperm.slane %v428, 0
        %v431 = vperm.slane %v428, 1
        %v432 = vperm.slane %v428, 2
        %v433 = vperm.slane %v428, 3
        %v438 = vmul.f32 %v424, %v430
        %v439 = vmul.f32 %v425, %v431
        %v440 = vmul.f32 %v426, %v432
        %v441 = vmul.f32 %v427, %v433
        %v442 = vld [vmem:[%s4] sm:$0xff]
        %444 = vset.pattern.permute.xlu0 0
        %445 = vperm.xlu0 %444, %v442
        %v446 = vpop.permute.xlu0 %445
        %v448 = vmul.f32 %v438, %v446
        %v449 = vmul.f32 %v439, %v446
        %v450 = vmul.f32 %v440, %v446
        %451 = vset.pattern.permute.xlu0 1
        %452 = vperm.xlu0 %451, %v442
        %v453 = vpop.permute.xlu0 %452
        %v455 = vmul.f32 %v438, %v453
        %v456 = vmul.f32 %v439, %v453
        %v457 = vmul.f32 %v440, %v453
        %v458 = vmul.f32 %v441, %v453
        %463 = vrot.lane.b32.xlu0 %v455, 127
        %v464 = vpop.permute.xlu0 %463
        %465 = vrot.lane.b32.xlu0 %v456, 127
        %v466 = vpop.permute.xlu0 %465
        %467 = vrot.lane.b32.xlu0 %v457, 127
        %v468 = vpop.permute.xlu0 %467
        %469 = vrot.lane.b32.xlu0 %v458, 127
        %v470 = vpop.permute.xlu0 %469
        %vm471 = vcmask 1039360
        %v472 = vsel %vm471, %v464, %v466
        %v473 = vsel %vm471, %v466, %v468
        %v474 = vsel %vm471, %v468, %v470
        %v478 = vadd.f32 %v448, %v472
        %v479 = vadd.f32 %v449, %v473
        %v480 = vadd.f32 %v450, %v474
        %481 = vset.pattern.permute.xlu0 2
        %482 = vperm.xlu0 %481, %v442
        %v483 = vpop.permute.xlu0 %482
        %v485 = vmul.f32 %v438, %v483
        %v486 = vmul.f32 %v439, %v483
        %v487 = vmul.f32 %v440, %v483
        %v488 = vmul.f32 %v441, %v483
        %493 = vrot.lane.b32.xlu0 %v485, 126
        %v494 = vpop.permute.xlu0 %493
        %495 = vrot.lane.b32.xlu0 %v486, 126
        %v496 = vpop.permute.xlu0 %495
        %497 = vrot.lane.b32.xlu0 %v487, 126
        %v498 = vpop.permute.xlu0 %497
        %499 = vrot.lane.b32.xlu0 %v488, 126
        %v500 = vpop.permute.xlu0 %499
        %vm501 = vcmask 1031168
        %v502 = vsel %vm501, %v494, %v496
        %v503 = vsel %vm501, %v496, %v498
        %v504 = vsel %vm501, %v498, %v500
        %v508 = vadd.f32 %v478, %v502
        %v509 = vadd.f32 %v479, %v503
        %v510 = vadd.f32 %v480, %v504
        %511 = vset.pattern.permute.xlu0 3
        %512 = vperm.xlu0 %511, %v442
        %v513 = vpop.permute.xlu0 %512
        %v515 = vmul.f32 %v438, %v513
        %v516 = vmul.f32 %v439, %v513
        %v517 = vmul.f32 %v440, %v513
        %v518 = vmul.f32 %v441, %v513
        %519 = vset.pattern.permute.xlu0 4
        %520 = vperm.xlu0 %519, %v442
        %v521 = vpop.permute.xlu0 %520
        %v523 = vmul.f32 %v438, %v521
        %v524 = vmul.f32 %v439, %v521
        %v525 = vmul.f32 %v440, %v521
        %v526 = vmul.f32 %v441, %v521
        %531 = vrot.lane.b32.xlu0 %v523, 127
        %v532 = vpop.permute.xlu0 %531
        %533 = vrot.lane.b32.xlu0 %v524, 127
        %v534 = vpop.permute.xlu0 %533
        %535 = vrot.lane.b32.xlu0 %v525, 127
        %v536 = vpop.permute.xlu0 %535
        %537 = vrot.lane.b32.xlu0 %v526, 127
        %v538 = vpop.permute.xlu0 %537
        %v539 = vsel %vm471, %v532, %v534
        %v540 = vsel %vm471, %v534, %v536
        %v541 = vsel %vm471, %v536, %v538
        %v546 = vadd.f32 %v515, %v539
        %v547 = vadd.f32 %v516, %v540
        %v548 = vadd.f32 %v517, %v541
        %v549 = vadd.f32 %v518, %v538
        %550 = vset.pattern.permute.xlu0 5
        %551 = vperm.xlu0 %550, %v442
        %v552 = vpop.permute.xlu0 %551
        %v554 = vmul.f32 %v438, %v552
        %v555 = vmul.f32 %v439, %v552
        %v556 = vmul.f32 %v440, %v552
        %v557 = vmul.f32 %v441, %v552
        %562 = vrot.lane.b32.xlu0 %v554, 126
        %v563 = vpop.permute.xlu0 %562
        %564 = vrot.lane.b32.xlu0 %v555, 126
        %v565 = vpop.permute.xlu0 %564
        %566 = vrot.lane.b32.xlu0 %v556, 126
        %v567 = vpop.permute.xlu0 %566
        %568 = vrot.lane.b32.xlu0 %v557, 126
        %v569 = vpop.permute.xlu0 %568
        %v570 = vsel %vm501, %v563, %v565
        %v571 = vsel %vm501, %v565, %v567
        %v572 = vsel %vm501, %v567, %v569
        %v577 = vadd.f32 %v546, %v570
        %v578 = vadd.f32 %v547, %v571
        %v579 = vadd.f32 %v548, %v572
        %v580 = vadd.f32 %v549, %v569
        %581 = vset.pattern.permute.xlu0 6
        %582 = vperm.xlu0 %581, %v442
        %v583 = vpop.permute.xlu0 %582
        %v585 = vmul.f32 %v438, %v583
        %v586 = vmul.f32 %v439, %v583
        %v587 = vmul.f32 %v440, %v583
        %v588 = vmul.f32 %v441, %v583
        %589 = vset.pattern.permute.xlu0 7
        %590 = vperm.xlu0 %589, %v442
        %v591 = vpop.permute.xlu0 %590
        %v593 = vmul.f32 %v438, %v591
        %v594 = vmul.f32 %v439, %v591
        %v595 = vmul.f32 %v440, %v591
        %v596 = vmul.f32 %v441, %v591
        %601 = vrot.lane.b32.xlu0 %v593, 127
        %v602 = vpop.permute.xlu0 %601
        %603 = vrot.lane.b32.xlu0 %v594, 127
        %v604 = vpop.permute.xlu0 %603
        %605 = vrot.lane.b32.xlu0 %v595, 127
        %v606 = vpop.permute.xlu0 %605
        %607 = vrot.lane.b32.xlu0 %v596, 127
        %v608 = vpop.permute.xlu0 %607
        %v609 = vsel %vm471, %v602, %v604
        %v610 = vsel %vm471, %v604, %v606
        %v611 = vsel %vm471, %v606, %v608
        %v616 = vadd.f32 %v585, %v609
        %v617 = vadd.f32 %v586, %v610
        %v618 = vadd.f32 %v587, %v611
        %v619 = vadd.f32 %v588, %v608
        %620 = vset.pattern.permute.xlu0 8
        %621 = vperm.xlu0 %620, %v442
        %v622 = vpop.permute.xlu0 %621
        %v624 = vmul.f32 %v438, %v622
        %v625 = vmul.f32 %v439, %v622
        %v626 = vmul.f32 %v440, %v622
        %v627 = vmul.f32 %v441, %v622
        %632 = vrot.lane.b32.xlu0 %v624, 126
        %v633 = vpop.permute.xlu0 %632
        %634 = vrot.lane.b32.xlu0 %v625, 126
        %v635 = vpop.permute.xlu0 %634
        %636 = vrot.lane.b32.xlu0 %v626, 126
        %v637 = vpop.permute.xlu0 %636
        %638 = vrot.lane.b32.xlu0 %v627, 126
        %v639 = vpop.permute.xlu0 %638
        %v640 = vsel %vm501, %v633, %v635
        %v641 = vsel %vm501, %v635, %v637
        %v642 = vsel %vm501, %v637, %v639
        %v647 = vadd.f32 %v616, %v640
        %v648 = vadd.f32 %v617, %v641
        %v649 = vadd.f32 %v618, %v642
        %v650 = vadd.f32 %v619, %v639
        %655 = vrot.lane.b32.xlu0 %v577, 110
        %v656 = vpop.permute.xlu0 %655
        %657 = vrot.lane.b32.xlu0 %v578, 110
        %v658 = vpop.permute.xlu0 %657
        %659 = vrot.lane.b32.xlu0 %v579, 110
        %v660 = vpop.permute.xlu0 %659
        %661 = vrot.lane.b32.xlu0 %v580, 110
        %v662 = vpop.permute.xlu0 %661
        %vm663 = vcmask 900096
        %v664 = vsel %vm663, %v656, %v658
        %v665 = vsel %vm663, %v658, %v660
        %v666 = vsel %vm663, %v660, %v662
        %v670 = vadd.f32 %v508, %v664
        %v671 = vadd.f32 %v509, %v665
        %v672 = vadd.f32 %v510, %v666
        %677 = vrot.lane.b32.xlu0 %v647, 92
        %v678 = vpop.permute.xlu0 %677
        %679 = vrot.lane.b32.xlu0 %v648, 92
        %v680 = vpop.permute.xlu0 %679
        %681 = vrot.lane.b32.xlu0 %v649, 92
        %v682 = vpop.permute.xlu0 %681
        %683 = vrot.lane.b32.xlu0 %v650, 92
        %v684 = vpop.permute.xlu0 %683
        %vm685 = vcmask 752640
        %v686 = vsel %vm685, %v678, %v680
        %v687 = vsel %vm685, %v680, %v682
        %v688 = vsel %vm685, %v682, %v684
        %v692 = vadd.f32 %v670, %v686
        %v693 = vadd.f32 %v671, %v687
        %v694 = vadd.f32 %v672, %v688
        %v695 = vld [vmem:[%s5] sm:$0xff]
        %697 = vset.pattern.permute.xlu0 0
        %698 = vperm.xlu0 %697, %v695
        %v699 = vpop.permute.xlu0 %698
        %v701 = vadd.f32 %v692, %v699
        %v702 = vadd.f32 %v693, %v699
        %v703 = vadd.f32 %v694, %v699
        %v704 = vmax.f32 %v701, 0.0
        %v705 = vmax.f32 %v702, 0.0
        %v706 = vmax.f32 %v703, 0.0
        %v707 = vmin.f32 %v704, 6.0
        %v708 = vmin.f32 %v705, 6.0
        %v709 = vmin.f32 %v706, 6.0
        %v710 = vld [vmem:[%s6] sm:$0x3]
        %v711 = vpack.c.bf16 %v707, %v707
        %v712 = vpack.c.bf16 %v708, %v708
        %v713 = vpack.c.bf16 %v709, %v709
        %v714 = vld [vmem:[%s7] sm:$0xf]
        %716 = vset.pattern.permute.xlu0 0
        %717 = vperm.xlu0 %716, %v714
        %v718 = vpop.permute.xlu0 %717
        %vm720 = vcmask 64512
        %v722 = vsel %vm720, %v710, 0
        %vm724 = vcmask 1043456
        %v726 = vsel %vm724, %v711, 0
        %v729 = vsel %vm724, %v712, 0
        %v732 = vsel %vm724, %v713, 0
        %734 = vmatpush.bf16.msra.mxu0 0
        %735 = vmatpush.bf16.msra.mxu0 0
        %736 = vmatpush.bf16.msra.mxu0 0
        %737 = vmatpush.bf16.msra.mxu0 0
        %738 = vmatpush.bf16.msra.mxu0 0
        %739 = vmatpush.bf16.msra.mxu0 0
        %740 = vmatpush.bf16.msra.mxu0 0
        %741 = vmatpush.bf16.msra.mxu0 %v726
        %742 = vmatmul.bf16.gmra.mxu0 %v722
        %v743 = vpop.f32.mrf.mxu0
        %v744 = vadd.f32 %v718, %v743
        %v745 = vpop.f32.mrf.mxu0
        %746 = vdwg.mxu0
        %747 = vmatpush.bf16.msra.mxu0 0
        %748 = vmatpush.bf16.msra.mxu0 0
        %749 = vmatpush.bf16.msra.mxu0 0
        %750 = vmatpush.bf16.msra.mxu0 0
        %751 = vmatpush.bf16.msra.mxu0 0
        %752 = vmatpush.bf16.msra.mxu0 0
        %753 = vmatpush.bf16.msra.mxu0 0
        %754 = vmatpush.bf16.msra.mxu0 %v729
        %755 = vmatmul.bf16.gmra.mxu0 %v722
        %v756 = vpop.f32.mrf.mxu0
        %v757 = vadd.f32 %v718, %v756
        %v758 = vpop.f32.mrf.mxu0
        %759 = vdwg.mxu0
        %760 = vmatpush.bf16.msra.mxu0 0
        %761 = vmatpush.bf16.msra.mxu0 0
        %762 = vmatpush.bf16.msra.mxu0 0
        %763 = vmatpush.bf16.msra.mxu0 0
        %764 = vmatpush.bf16.msra.mxu0 0
        %765 = vmatpush.bf16.msra.mxu0 0
        %766 = vmatpush.bf16.msra.mxu0 0
        %767 = vmatpush.bf16.msra.mxu0 %v732
        %768 = vmatmul.bf16.gmra.mxu0 %v722
        %v769 = vpop.f32.mrf.mxu0
        %v770 = vadd.f32 %v718, %v769
        %v771 = vpop.f32.mrf.mxu0
        %772 = vdwg.mxu0
        %773 = vst [vmem:[#allocation1] ss:$2 sm:$0xff] %v325
        %s774 = scalar_lea.vmem [#allocation1], 16
        %775 = vst [vmem:[%s774] ss:$2 sm:$0xff] %v326
        %v776 = vld.sshfl [vmem:[#allocation1] sm:$0xff pattern:$0x75316420]
        %v777 = vld.sshfl [vmem:[#allocation1 + $0x8] sm:$0xff pattern:$0x75316420]
        %v778 = vld.sshfl [vmem:[#allocation1 + $0x10] sm:$0xff pattern:$0x75316420]
        %v779 = vld.sshfl [vmem:[#allocation1 + $0x18] sm:$0xff pattern:$0x75316420]
        %780 = vrot.lane.b32.xlu0 %v776, 109
        %v781 = vpop.permute.xlu0 %780
        %782 = vrot.lane.b32.xlu0 %v777, 109
        %v783 = vpop.permute.xlu0 %782
        %784 = vrot.lane.b32.xlu0 %v778, 109
        %v785 = vpop.permute.xlu0 %784
        %786 = vrot.lane.b32.xlu0 %v779, 109
        %v787 = vpop.permute.xlu0 %786
        %vm788 = vcmask 891904
        %v789 = vsel %vm788, %v781, %v783
        %v790 = vsel %vm788, %v783, %v785
        %v791 = vsel %vm788, %v785, %v787
        %v795 = vadd.f32 %v744, %v789
        %v796 = vadd.f32 %v757, %v790
        %v797 = vadd.f32 %v770, %v791
        %v800 = vrot.slane %v796, 4
        %v801 = vsel %vm724, %v795, %v800
        %803 = vst [vmem:[%s323] sm:$0xff] %v801
        %804 = vst [vmem:[%s323 + $0x8] sm:$0xf] %v797
        %s805 = sand.u32 %s206, 1
        %s806 = scalar_lea.sflag [#allocation4], %s805
        %s807 = sand.u32 %s206, 1
        %s808 = smul.addr %s807, 12
        %s809 = scalar_lea.vmem [#allocation5], %s808
        // Predicated region
        $region57: #{tpu_custom_call.1} parent=51 // pred_check
          %p810 = pneg %p216
        $region58: #{tpu_custom_call.1} parent=51 // pred_check_branch
          %812 = sbr.rel (%p810) target = $region60
        $region59: #{tpu_custom_call.1} parent=51 // pred_region
          %814 = vsyncadd %s806, 0
          %s815 = smul.addr %s25, 3
          %s816 = smul.addr %s815, 4
          %s817 = scalar_lea.hbm %s8, %s816
          %s819 = sshll.u32 %s809, 4
          %s820 = int_to_ptr.vmem [resolvable:$true] %s819
          %s821 = sshll.u32 %s817, 4
          %s822 = int_to_ptr.hbm [resolvable:$true] %s821
          %824 = dma.vmem_to_hbm [thread:$0]  %s820, 192, %s822, %s806
        $region60: #{tpu_custom_call.1} parent=51 // pred_fallthru
          _
      $region52: #{tpu_custom_call.1} parent=5 // pred_fallthru
        _
      %p825 = scmp.le.s32.totalorder 2, %s20
      // Predicated region
      $region61: #{tpu_custom_call.1} parent=5 // pred_check
        %p826 = pneg %p825
      $region62: #{tpu_custom_call.1} parent=5 // pred_check_branch
        %828 = sbr.rel (%p826) target = $region64
      $region63: #{tpu_custom_call.1} parent=5 // pred_region
        %s829 = ssub.s32 %s20, 2
        // Predicated region
        $region65: #{tpu_custom_call.1} parent=63 // pred_check
          %p830 = pneg %p222
        $region66: #{tpu_custom_call.1} parent=63 // pred_check_branch
          %832 = sbr.rel (%p830) target = $region68
        $region67: #{tpu_custom_call.1} parent=63 // pred_region
          %s833 = sand.u32 %s207, 1
          %s834 = scalar_lea.sflag [#allocation4], %s833
          %s835 = sand.u32 %s207, 1
          %s836 = smul.addr %s835, 12
          %s837 = scalar_lea.vmem [#allocation5], %s836
          %839 = dma.done %s834, 192
        $region68: #{tpu_custom_call.1} parent=63 // pred_fallthru
          _
      $region64: #{tpu_custom_call.1} parent=5 // pred_fallthru
        _
    $region6: #{tpu_custom_call.1} parent=1 // loop_footer
      %s24 = sadd.s32 1, %s20
    $region7: #{tpu_custom_call.1} parent=1 // loop_footer_branch
      %19 = sbr.rel target = $region3
    $region8: #{tpu_custom_call.1} parent=1 // loop_exit
      _
    %840 = vsyncpa [#allocation3], 1
    %s841 = scalar_lea.sflag [#allocation3], 1
    %842 = vsyncpa %s841, 1
    %843 = vsyncpa [#allocation4], 1
    %s844 = scalar_lea.sflag [#allocation4], 1
    %845 = vsyncpa %s844, 1

</llo_original>
